<compile_context>
chip_gen: v6e
topology: v6e:2x2x1
jax: 0.10.0
libtpu: 0.0.40
codegen_flags: <defaults>
</compile_context>

<pallas_src>
import functools

import jax
import jax.numpy as jnp
from jax.experimental import pallas as pl
from jax.experimental.pallas import tpu as pltpu


def _round_up(x, m):
    return (x + m - 1) // m * m


def _focal_loss_kernel(n_ref, x_ref, t_ref, o_ref, *, gamma):
    i = pl.program_id(0)
    x = x_ref[...].astype(jnp.float32)          # (TILE_N, C)  cast after load
    t = t_ref[...]                              # (TILE_N, 1)  int32 class indices
    tn, c = x.shape

    # Numerically-stable log-sum-exp along the class (lane) axis.
    m = jnp.max(x, axis=-1, keepdims=True)      # (TILE_N, 1)
    z = x - m                                   # (TILE_N, C)
    lse = jnp.log(jnp.sum(jnp.exp(z), axis=-1, keepdims=True))   # (TILE_N, 1)

    # Fused one-hot gather: z_t[r] = z[r, target[r]].
    # (1, C) iota broadcasts against the (TILE_N, 1) targets -> no (TILE_N, C) int32 temp.
    cls_idx = jax.lax.broadcasted_iota(jnp.int32, (1, c), 1)
    z_t = jnp.sum(jnp.where(cls_idx == t, z, 0.0), axis=-1, keepdims=True)

    ce = jnp.maximum(lse - z_t, 0.0)            # CE >= 0 (guards rounding / pow)
    pt = jnp.exp(-ce)
    omp = 1.0 - pt                              # in [0, 1] since ce >= 0

    g = float(gamma)
    if g == 0.0:
        f = ce
    elif g.is_integer() and 1.0 <= g <= 4.0:
        w = omp
        for _ in range(int(g) - 1):             # integer power via repeated multiply
            w = w * omp
        f = w * ce
    else:
        f = (omp ** jnp.float32(g)) * ce        # general (non-integer) gamma

    last = pl.num_programs(0) - 1

    @pl.when(i < last)                          # full tiles: no masking needed
    def _():
        o_ref[...] = jnp.sum(f, axis=0, keepdims=True).reshape(1, 1, 1)

    @pl.when(i == last)                         # tail tile: mask padded / garbage rows
    def _():
        row = jax.lax.broadcasted_iota(jnp.int32, (tn, 1), 0) + i * tn
        # SELECT (not multiply): undefined data in the partial tail block may be NaN/Inf.
        fm = jnp.where(row < n_ref[0], f, 0.0)
        o_ref[...] = jnp.sum(fm, axis=0, keepdims=True).reshape(1, 1, 1)


def focal_loss(inputs, targets, alpha=1.0, gamma=1.0):
    """inputs: (N, C) float logits (native dtype), targets: (N,) int class indices -> scalar f32."""
    n, c = inputs.shape
    itemsize = jnp.dtype(inputs.dtype).itemsize
    sub = {4: 8, 2: 16, 1: 32}.get(itemsize, 8)          # sublane multiple for the dtype

    # Generation-aware VMEM capacity (v5e/v6e: 128 MiB, v7x: 64 MiB per TC).
    try:
        vmem_cap = int(pltpu.get_tpu_info().vmem_capacity_bytes)
    except Exception:
        vmem_cap = 64 << 20                              # conservative (v7x)

    # Working-set budget: ~48 MiB on 128 MiB parts, ~28 MiB on v7x.
    budget = min(max(vmem_cap // 2 - (4 << 20), 16 << 20), 48 << 20)

    # Per-row working set:
    #   2 double-buffered input rows + ~4 f32 (TILE_N, C) intermediates
    #   (x_f32, z, exp(z), select temp) + 2 lane-padded (TILE_N, 1) int32 target buffers.
    per_row = 2 * c * itemsize + 4 * c * 4 + 2 * 128 * 4

    n_sub = _round_up(n, sub)
    tile_n = max(sub, (budget // per_row) // sub * sub)
    if n_sub >= 1024:
        # Large batch: keep >= 2 tiles (each still above the ~512-row DMA-efficiency knee)
        # so v7x can shard the "parallel" grid axis across its 2 TensorCores.
        tile_n = min(tile_n, _round_up(pl.cdiv(n_sub, 2), sub))
    tile_n = min(tile_n, n_sub)
    num_tiles = pl.cdiv(n, tile_n)

    t2d = targets.astype(jnp.int32).reshape(n, 1)        # metadata reshape, no HBM copy
    n_arr = jnp.array([n], dtype=jnp.int32)              # scalar-prefetch valid-row count

    # VMEM limit derived from the actual working set, with headroom, capped below physical.
    cap_hi = max(vmem_cap - (8 << 20), 32 << 20)
    vmem_limit = int(min(max(tile_n * per_row + (4 << 20), 32 << 20), cap_hi))

    partials = pl.pallas_call(
        functools.partial(_focal_loss_kernel, gamma=float(gamma)),
        out_shape=jax.ShapeDtypeStruct((num_tiles, 1, 1), jnp.float32),
        grid_spec=pltpu.PrefetchScalarGridSpec(
            num_scalar_prefetch=1,
            grid=(num_tiles,),
            in_specs=[
                pl.BlockSpec((tile_n, c), lambda i, n_ref: (i, 0)),
                pl.BlockSpec((tile_n, 1), lambda i, n_ref: (i, 0)),
            ],
            out_specs=pl.BlockSpec((1, 1, 1), lambda i, n_ref: (i, 0, 0)),
        ),
        compiler_params=pltpu.CompilerParams(
            dimension_semantics=("parallel",),
            vmem_limit_bytes=vmem_limit,
        ),
    )(n_arr, inputs, t2d)

    # Fold alpha and the mean's 1/N into one scalar multiply (plain JAX, tiny).
    return (float(alpha) / n) * jnp.sum(partials)


def _focal_loss_ref(inputs, targets, alpha=1.0, gamma=1.0):
    logp = jax.nn.log_softmax(inputs.astype(jnp.float32), axis=-1)
    ce = -jnp.take_along_axis(logp, targets[:, None].astype(jnp.int32), axis=-1)[:, 0]
    pt = jnp.exp(-ce)
    return jnp.mean(alpha * (1.0 - pt) ** gamma * ce)


if __name__ == "__main__":
    key = jax.random.PRNGKey(0)
    k1, k2, k3, k4 = jax.random.split(key, 4)

    # Small shapes: batch=8, num_classes=32 (plus a non-multiple batch to exercise masking).
    N, C = 8, 32
    logits = jax.random.normal(k1, (N, C), dtype=jnp.float32)
    targets = jax.random.randint(k2, (N,), 0, C, dtype=jnp.int32)

    loss = focal_loss(logits, targets, alpha=1.0, gamma=1.0)
    jax.block_until_ready(loss)
    ref = _focal_loss_ref(logits, targets, alpha=1.0, gamma=1.0)
    assert jnp.allclose(loss, ref, atol=1e-5, rtol=1e-5), (loss, ref)

    loss2 = focal_loss(logits, targets, alpha=0.25, gamma=2.0)
    jax.block_until_ready(loss2)
    ref2 = _focal_loss_ref(logits, targets, alpha=0.25, gamma=2.0)
    assert jnp.allclose(loss2, ref2, atol=1e-5, rtol=1e-5), (loss2, ref2)

    N2 = 13  # not a multiple of the sublane tile -> exercises the in-kernel tail row mask
    logits3 = jax.random.normal(k3, (N2, C), dtype=jnp.float32)
    targets3 = jax.random.randint(k4, (N2,), 0, C, dtype=jnp.int32)
    loss3 = focal_loss(logits3, targets3, alpha=1.0, gamma=1.0)
    jax.block_until_ready(loss3)
    ref3 = _focal_loss_ref(logits3, targets3, alpha=1.0, gamma=1.0)
    assert jnp.allclose(loss3, ref3, atol=1e-5, rtol=1e-5), (loss3, ref3)

    print("KERNEL_OK")
</pallas_src>

<mosaic_0001>
module attributes {stable_mosaic.version = 11 : i64} {
  func.func @_focal_loss_kernel(%arg0: i32, %arg1: memref<1xi32, #tpu.memory_space<smem>>, %arg2: memref<8x32xf32, #tpu.memory_space<vmem>>, %arg3: memref<8x1xi32, #tpu.memory_space<vmem>>, %arg4: memref<1x1x1xf32, #tpu.memory_space<vmem>>) attributes {dimension_semantics = [#tpu.dimension_semantics<parallel>], iteration_bounds = array<i64: 1>, scalar_prefetch = 1 : i64, scratch_operands = 0 : i64, tpu.core_type = #tpu.core_type<tc>, window_params = [{transform_indices = @transform_0, window_bounds = array<i64: 8, 32>}, {transform_indices = @transform_1, window_bounds = array<i64: 8, 1>}, {transform_indices = @transform_2, window_bounds = array<i64: 1, 1, 1>}]} {
    %c0 = arith.constant 0 : index
    %c0_0 = arith.constant 0 : index
    %0 = vector.load %arg2[%c0, %c0_0] : memref<8x32xf32, #tpu.memory_space<vmem>>, vector<8x32xf32>
    %c0_1 = arith.constant 0 : index
    %c0_2 = arith.constant 0 : index
    %1 = vector.load %arg3[%c0_1, %c0_2] : memref<8x1xi32, #tpu.memory_space<vmem>>, vector<8x1xi32>
    %cst = arith.constant dense<0xFF800000> : vector<8xf32>
    %2 = vector.multi_reduction <maximumf>, %0, %cst [1] : vector<8x32xf32> to vector<8xf32>
    %3 = vector.shape_cast %2 : vector<8xf32> to vector<8x1xf32>
    %4 = vector.broadcast %3 : vector<8x1xf32> to vector<8x32xf32>
    %5 = arith.subf %0, %4 : vector<8x32xf32>
    %6 = math.exp %5 : vector<8x32xf32>
    %cst_3 = arith.constant dense<0.000000e+00> : vector<8xf32>
    %7 = vector.multi_reduction <add>, %6, %cst_3 [1] : vector<8x32xf32> to vector<8xf32>
    %8 = vector.shape_cast %7 : vector<8xf32> to vector<8x1xf32>
    %9 = math.log %8 : vector<8x1xf32>
    %10 = tpu.iota {dimensions = array<i32: 1>} : vector<1x32xi32>
    %11 = vector.broadcast %10 : vector<1x32xi32> to vector<8x32xi32>
    %12 = vector.broadcast %1 : vector<8x1xi32> to vector<8x32xi32>
    %13 = arith.cmpi eq, %11, %12 : vector<8x32xi32>
    %cst_4 = arith.constant 0.000000e+00 : f32
    %14 = vector.broadcast %cst_4 : f32 to vector<8x32xf32>
    %15 = arith.select %13, %5, %14 : vector<8x32xi1>, vector<8x32xf32>
    %cst_5 = arith.constant dense<0.000000e+00> : vector<8xf32>
    %16 = vector.multi_reduction <add>, %15, %cst_5 [1] : vector<8x32xf32> to vector<8xf32>
    %17 = vector.shape_cast %16 : vector<8xf32> to vector<8x1xf32>
    %18 = arith.subf %9, %17 : vector<8x1xf32>
    %cst_6 = arith.constant 0.000000e+00 : f32
    %19 = vector.broadcast %cst_6 : f32 to vector<8x1xf32>
    %20 = arith.maximumf %18, %19 : vector<8x1xf32>
    %cst_7 = arith.constant 0.000000e+00 : f32
    %21 = vector.broadcast %cst_7 : f32 to vector<8x1xf32>
    %22 = arith.subf %21, %20 : vector<8x1xf32>
    %23 = math.exp %22 : vector<8x1xf32>
    %cst_8 = arith.constant 1.000000e+00 : f32
    %24 = vector.broadcast %cst_8 : f32 to vector<8x1xf32>
    %25 = arith.subf %24, %23 : vector<8x1xf32>
    %26 = arith.mulf %25, %20 : vector<8x1xf32>
    %c0_i32 = arith.constant 0 : i32
    %27 = arith.cmpi slt, %arg0, %c0_i32 : i32
    %28 = arith.extui %27 : i1 to i32
    %c0_i32_9 = arith.constant 0 : i32
    %29 = arith.cmpi ne, %28, %c0_i32_9 : i32
    scf.if %29 {
      %cst_12 = arith.constant dense<0.000000e+00> : vector<1xf32>
      %33 = vector.multi_reduction <add>, %26, %cst_12 [0] : vector<8x1xf32> to vector<1xf32>
      %34 = vector.shape_cast %33 : vector<1xf32> to vector<1x1xf32>
      %35 = vector.shape_cast %34 : vector<1x1xf32> to vector<1x1x1xf32>
      %c0_13 = arith.constant 0 : index
      %c0_14 = arith.constant 0 : index
      %c0_15 = arith.constant 0 : index
      %36 = vector.load %arg4[%c0_13, %c0_14, %c0_15] : memref<1x1x1xf32, #tpu.memory_space<vmem>>, vector<1x1x1xf32>
      tpu.vector_store %arg4[%c0_13, %c0_14, %c0_15], %35 {strides = array<i32>} : memref<1x1x1xf32, #tpu.memory_space<vmem>>, vector<1x1x1xf32>,
    } else {
    }
    %c0_i32_10 = arith.constant 0 : i32
    %30 = arith.cmpi eq, %arg0, %c0_i32_10 : i32
    %31 = arith.extui %30 : i1 to i32
    %c0_i32_11 = arith.constant 0 : i32
    %32 = arith.cmpi ne, %31, %c0_i32_11 : i32
    scf.if %32 {
      %33 = tpu.iota {dimensions = array<i32: 0>} : vector<8x1xi32>
      %c8_i32 = arith.constant 8 : i32
      %34 = arith.muli %arg0, %c8_i32 : i32
      %35 = vector.broadcast %34 : i32 to vector<8x1xi32>
      %36 = arith.addi %33, %35 : vector<8x1xi32>
      %c0_12 = arith.constant 0 : index
      %37 = memref.load %arg1[%c0_12] : memref<1xi32, #tpu.memory_space<smem>>
      %38 = vector.broadcast %37 : i32 to vector<8x1xi32>
      %39 = arith.cmpi slt, %36, %38 : vector<8x1xi32>
      %cst_13 = arith.constant 0.000000e+00 : f32
      %40 = vector.broadcast %cst_13 : f32 to vector<8x1xf32>
      %41 = arith.select %39, %26, %40 : vector<8x1xi1>, vector<8x1xf32>
      %cst_14 = arith.constant dense<0.000000e+00> : vector<1xf32>
      %42 = vector.multi_reduction <add>, %41, %cst_14 [0] : vector<8x1xf32> to vector<1xf32>
      %43 = vector.shape_cast %42 : vector<1xf32> to vector<1x1xf32>
      %44 = vector.shape_cast %43 : vector<1x1xf32> to vector<1x1x1xf32>
      %c0_15 = arith.constant 0 : index
      %c0_16 = arith.constant 0 : index
      %c0_17 = arith.constant 0 : index
      %45 = vector.load %arg4[%c0_15, %c0_16, %c0_17] : memref<1x1x1xf32, #tpu.memory_space<vmem>>, vector<1x1x1xf32>
      tpu.vector_store %arg4[%c0_15, %c0_16, %c0_17], %44 {strides = array<i32>} : memref<1x1x1xf32, #tpu.memory_space<vmem>>, vector<1x1x1xf32>,
    } else {
    }
    return
  }
  func.func @transform_0(%arg0: i32, %arg1: memref<1xi32, #tpu.memory_space<smem>>) -> (i32, i32) {
    %c0_i32 = arith.constant 0 : i32
    %c0_i32_0 = arith.constant 0 : i32
    return %arg0, %c0_i32 : i32, i32
  }
  func.func @transform_1(%arg0: i32, %arg1: memref<1xi32, #tpu.memory_space<smem>>) -> (i32, i32) {
    %c0_i32 = arith.constant 0 : i32
    %c0_i32_0 = arith.constant 0 : i32
    return %arg0, %c0_i32 : i32, i32
  }
  func.func @transform_2(%arg0: i32, %arg1: memref<1xi32, #tpu.memory_space<smem>>) -> (i32, i32, i32) {
    %c0_i32 = arith.constant 0 : i32
    %c0_i32_0 = arith.constant 0 : i32
    %c0_i32_1 = arith.constant 0 : i32
    return %arg0, %c0_i32, %c0_i32_0 : i32, i32, i32
  }
}

</mosaic_0001>

<llo_original>
// kernel: tpu_custom_call.1
$region0: #{tpu_custom_call.1}
  #allocation0 [shape = 'u32[]', space=smem, size = 0x4, offset = 0x4, fixed_abs, tag = 'smem constant byte address 0x4 - core index']
  #allocation1 [shape = 'u32[144,128]{1,0:T(1,128)}', space=vmem, size = 0x12000, scoped, tag = 'internal scratch']
  #allocation2 [shape = 's32[1]{0}', space=sflag, size = 0x4, scoped, tag = 'scoped memory for tpu_custom_call.1']
  #allocation3 [shape = 's32[1]{0:T(128)S(6)}', space=smem, size = 0x200, scoped, tag = 'prefetched SMEM operand 0']
  %s0 = inlined_call_operand.<no memory space> [shape: s32[1], index: 0, kind: input, shape index: {}]
  %s1 = inlined_call_operand.vmem [shape: f32[8,32], index: 1, kind: input, shape index: {}]
  %s2 = inlined_call_operand.vmem [shape: s32[8,1], index: 2, kind: input, shape index: {}]
  %s3 = inlined_call_operand.hbm [shape: f32[1,1,1], index: 3, kind: output, shape index: {}]
  %s4 = sld [smem:[#allocation0]]
  $region26: #{tpu_custom_call.1} parent=0
    _
  %s6 = ssub.s32 1, %s4
  %s7 = scalar_select 0, %s6, %s4
  %8 = sst [smem:[#allocation3]] %s0
  $region1: #{tpu_custom_call.1} parent=0
    #allocation4 [shape = 'u8[512]{0}', space=vmem, size = 0x400, scoped, tag = 'output window, operand 0, single buffered']
    #allocation5 [shape = 's32[1]{0}', space=sflag, size = 0x4, scoped, tag = 'scoped memory for tpu_custom_call.1']
    %9 = vsyncpa [#allocation5], 0
    // Predicated region
    $region2: #{tpu_custom_call.1} parent=1 // pred_check
      _
    $region3: #{tpu_custom_call.1} parent=1 // pred_check_branch
      %11 = sbr.rel (0) target = $region5
    $region4: #{tpu_custom_call.1} parent=1 // pred_region
      _
    $region5: #{tpu_custom_call.1} parent=1 // pred_fallthru
      _
    // Predicated region
    $region6: #{tpu_custom_call.1} parent=1 // pred_check
      _
    $region7: #{tpu_custom_call.1} parent=1 // pred_check_branch
      %13 = sbr.rel (0) target = $region9
    $region8: #{tpu_custom_call.1} parent=1 // pred_region
      _
    $region9: #{tpu_custom_call.1} parent=1 // pred_fallthru
      _
    %v14 = vld [vmem:[%s1] sm:$0xff]
    %v15 = vld [vmem:[%s2] sm:$0xff]
    %vm16 = vcmask 261120
    %v17 = vsel %vm16, %v14, -inf
    %18 = vmax.xlane.f32.xlu0 %v17
    %v19 = vpop.xlane.xlu0 %18
    %v20 = vsub.f32 %v14, %v19
    %v21 = vmul.f32 %v20, 1.442695
    %v22 = vpow.pop %v21
    %v23 = vsel %vm16, %v22, 0.0
    %24 = vadd.xlane.f32.xlu0 %v23
    %v25 = vpop.xlane.xlu0 %24
    %v26 = vlog2.pop %v25
    %v27 = vmul.f32 %v26, 0.6931472
    %v28 = vlaneseq
    %v29 = vand.u32 %v28, 127
    %30 = vset.pattern.permute.xlu0 0
    %31 = vperm.xlu0 %30, %v15
    %v32 = vpop.permute.xlu0 %31
    %vm33 = vcmp.eq.s32.totalorder %v29, %v32
    %v34 = vsel %vm33, %v20, 0.0
    %v35 = vsel %vm16, %v34, 0.0
    %36 = vadd.xlane.f32.xlu0 %v35
    %v37 = vpop.xlane.xlu0 %36
    %v38 = vsub.f32 %v27, %v37
    %v39 = vmax.f32 %v38, 0.0
    %v40 = vsub.f32 0.0, %v39
    %v41 = vmul.f32 %v40, 1.442695
    %v42 = vpow.pop %v41
    %v43 = vsub.f32 1.0, %v42
    %v44 = vmul.f32 %v43, %v39
    %p45 = scmp.lt.s32.totalorder 0, 0
    // Predicated region
    $region10: #{tpu_custom_call.1} parent=1 // pred_check
      %p46 = pneg %p45
    $region11: #{tpu_custom_call.1} parent=1 // pred_check_branch
      %48 = sbr.rel (%p46) target = $region13
    $region12: #{tpu_custom_call.1} parent=1 // pred_region
      %v49 = vrot.slane %v44, 4
      %v50 = vadd.f32 %v44, %v49
      %v51 = vrot.slane %v50, 2
      %v52 = vadd.f32 %v50, %v51
      %v53 = vrot.slane %v52, 1
      %v54 = vadd.f32 %v52, %v53
      %vm55 = vcmask 0
      %56 = vst.msk [vmem:[#allocation4] sm:$0x1] %vm55, %v54
    $region13: #{tpu_custom_call.1} parent=1 // pred_fallthru
      _
    %p57 = scmp.eq.s32.totalorder 0, 0
    // Predicated region
    $region14: #{tpu_custom_call.1} parent=1 // pred_check
      %p58 = pneg %p57
    $region15: #{tpu_custom_call.1} parent=1 // pred_check_branch
      %60 = sbr.rel (%p58) target = $region17
    $region16: #{tpu_custom_call.1} parent=1 // pred_region
      %v61 = vlaneseq
      %v62 = vshrl.u32 %v61, 7
      %s63 = smul.u32 0, 8
      %v64 = vstv %s63
      %v65 = vadd.s32 %v62, %v64
      %s66 = sld [smem:[#allocation3]]
      %v67 = vstv %s66
      %vm68 = vcmp.lt.s32.totalorder %v65, %v67
      %v69 = vsel %vm68, %v44, 0.0
      %v70 = vrot.slane %v69, 4
      %v71 = vadd.f32 %v69, %v70
      %v72 = vrot.slane %v71, 2
      %v73 = vadd.f32 %v71, %v72
      %v74 = vrot.slane %v73, 1
      %v75 = vadd.f32 %v73, %v74
      %vm76 = vcmask 0
      %77 = vst.msk [vmem:[#allocation4] sm:$0x1] %vm76, %v75
    $region17: #{tpu_custom_call.1} parent=1 // pred_fallthru
      _
    // Predicated region
    $region18: #{tpu_custom_call.1} parent=1 // pred_check
      _
    $region19: #{tpu_custom_call.1} parent=1 // pred_check_branch
      %79 = sbr.rel (0) target = $region21
    $region20: #{tpu_custom_call.1} parent=1 // pred_region
      %s81 = ssub.s32 16, 16
      %82 = vsyncadd [#allocation5], %s81
      %s84 = sshll.u32 [#allocation4], 4
      %s85 = int_to_ptr.vmem [resolvable:$true] %s84
      %87 = dma.vmem_to_hbm [thread:$0]  %s85, 16, %s3, [#allocation5]
    $region21: #{tpu_custom_call.1} parent=1 // pred_fallthru
      _
    // Predicated region
    $region22: #{tpu_custom_call.1} parent=1 // pred_check
      _
    $region23: #{tpu_custom_call.1} parent=1 // pred_check_branch
      %89 = sbr.rel (0) target = $region25
    $region24: #{tpu_custom_call.1} parent=1 // pred_region
      %90 = dma.done [#allocation5], 16
    $region25: #{tpu_custom_call.1} parent=1 // pred_fallthru
      _
    %91 = vsyncpa [#allocation5], 1

</llo_original>
